<compile_context>
chip_gen: v5e
topology: v5e:2x2
jax: 0.10.0
libtpu: 0.0.40
codegen_flags: <defaults>
</compile_context>

<pallas_src>
import jax
import jax.numpy as jnp
from jax.experimental import pallas as pl
from jax.experimental.pallas import tpu as pltpu

N_FEATS = 128   # self.n_feats (DINO embed_dim), kept small but lane-aligned
DIM = 64        # self.dim (projection dim)
PATCH = 8       # self.patch_size


def _round_up(x, m):
    return ((x + m - 1) // m) * m


def _clusterer_kernel(x_ref, wa_ref, ba_ref, wbx_ref, wbh_ref, bb_ref, out_ref):
    """Fused clusterer + ema heads for one token tile.

    out[:, :dim] = cluster1(x) + cluster2(x)
    out[:, dim:] = ema_model1(x) + ema_model2(x)
    """
    x = x_ref[...].astype(jnp.bfloat16)                          # (tm, C) in-kernel cast
    # first 1x1 conv of both nonlinear heads, one wide matmul (K=C, N=2C)
    h = jnp.dot(x, wa_ref[...], preferred_element_type=jnp.float32)
    h = jnp.maximum(h + ba_ref[...], 0.0)                        # bias+relu in f32
    # linear heads + second convs of the nonlinear heads, accumulated in f32.
    # No lane concat: two dots fed straight from the input block and from h.
    out = jnp.dot(x, wbx_ref[...], preferred_element_type=jnp.float32)
    out = out + jnp.dot(h.astype(jnp.bfloat16), wbh_ref[...],
                        preferred_element_type=jnp.float32)
    out_ref[...] = (out + bb_ref[...]).astype(out_ref.dtype)


def pack_clusterer_params(params, ema_params, compute_dtype=jnp.bfloat16):
    """Pack the 12 head tensors into 5 kernel operands (done once per call)."""
    c = params['w2a'].shape[0]
    dim = params['w1'].shape[1]
    wa = jnp.concatenate([params['w2a'], ema_params['w2a']], axis=1)         # (C, 2C)
    ba = jnp.concatenate([params['b2a'], ema_params['b2a']], axis=1)         # (1, 2C)
    wbx = jnp.concatenate([params['w1'], ema_params['w1']], axis=1)          # (C, 2*dim)
    z = jnp.zeros((c, dim), jnp.float32)
    wbh = jnp.concatenate([
        jnp.concatenate([params['w2b'], z],                 axis=1),         # h_c rows
        jnp.concatenate([z,             ema_params['w2b']], axis=1),         # h_e rows
    ], axis=0)                                                               # (2C, 2*dim)
    bb = jnp.concatenate([params['b1'] + params['b2b'],
                          ema_params['b1'] + ema_params['b2b']], axis=1)     # (1, 2*dim)
    return (wa.astype(compute_dtype), ba.astype(jnp.float32),
            wbx.astype(compute_dtype), wbh.astype(compute_dtype),
            bb.astype(jnp.float32))


def clusterer_pallas(x_tokens, wa, ba, wbx, wbh, bb, *, tm=2048,
                     out_dtype=jnp.bfloat16):
    """x_tokens: (N, C) f32.  Returns (code (N, dim), code_ema (N, dim)) bf16."""
    n, c = x_tokens.shape
    two_dim = wbx.shape[1]
    # Tile over tokens.  Cap tm so the parallel grid has >=2 steps whenever
    # possible (both v7x TensorCores get work); tm stays a multiple of 8.
    tm = max(8, min(tm, _round_up(pl.cdiv(n, 2), 8)))
    grid = (pl.cdiv(n, tm),)   # ragged last block: Pallas masks its stores

    out = pl.pallas_call(
        _clusterer_kernel,
        grid=grid,
        in_specs=[
            pl.BlockSpec((tm, c), lambda i: (i, 0)),
            pl.BlockSpec(wa.shape, lambda i: (0, 0)),    # full-array weight blocks
            pl.BlockSpec(ba.shape, lambda i: (0, 0)),
            pl.BlockSpec(wbx.shape, lambda i: (0, 0)),
            pl.BlockSpec(wbh.shape, lambda i: (0, 0)),
            pl.BlockSpec(bb.shape, lambda i: (0, 0)),
        ],
        out_specs=pl.BlockSpec((tm, two_dim), lambda i: (i, 0)),
        out_shape=jax.ShapeDtypeStruct((n, two_dim), out_dtype),
        compiler_params=pltpu.CompilerParams(
            dimension_semantics=("parallel",)),
    )(x_tokens, wa, ba, wbx, wbh, bb)

    dim = two_dim // 2
    return out[:, :dim], out[:, dim:]


def init_params(key, n_feats=N_FEATS, dim=DIM):
    """Stand-in for the Conv2d(1x1) weights of the clusterer heads.

    PyTorch conv weight shape (out, in, 1, 1) is stored here as (in, out) for
    the token-major matmul.  NOTE: in the original module the ema heads start
    as copies of the cluster heads; here they get independent weights so the
    ema path is validated on its own (forward semantics are identical).
    """
    ks = jax.random.split(key, 12)

    def u(k, shape, fan_in):
        bound = 1.0 / jnp.sqrt(fan_in)
        return jax.random.uniform(k, shape, jnp.float32, -bound, bound)

    def head(kk):
        return {
            'w1':  u(kk[0], (n_feats, dim), n_feats),
            'b1':  u(kk[1], (1, dim), n_feats),
            'w2a': u(kk[2], (n_feats, n_feats), n_feats),
            'b2a': u(kk[3], (1, n_feats), n_feats),
            'w2b': u(kk[4], (n_feats, dim), n_feats),
            'b2b': u(kk[5], (1, dim), n_feats),
        }

    return head(ks[:6]), head(ks[6:])


def dino_featurizer_forward(img, feat, params, ema_params):
    """Eval forward: returns (image_feat, code, code_ema), all NCHW like PyTorch."""
    B, _, Himg, Wimg = img.shape
    assert Himg % PATCH == 0 and Wimg % PATCH == 0
    feat_h, feat_w = Himg // PATCH, Wimg // PATCH
    C = feat.shape[-1]

    # feat_type == 'feat': drop CLS token, reshape to (B, H, W, C)
    image_feat_nhwc = feat[:, 1:, :].reshape(B, feat_h, feat_w, C)
    image_feat = jnp.transpose(image_feat_nhwc, (0, 3, 1, 2))  # NCHW

    # Dropout2d is identity in eval mode -> feed image_feat straight to heads.
    # f32 tokens go straight into the kernel; the bf16 MXU cast happens in-kernel.
    x_tokens = image_feat_nhwc.reshape(B * feat_h * feat_w, C)
    packed = pack_clusterer_params(params, ema_params)
    code_flat, code_ema_flat = clusterer_pallas(x_tokens, *packed)

    def to_nchw(flat):
        return jnp.transpose(flat.reshape(B, feat_h, feat_w, -1), (0, 3, 1, 2))

    return image_feat, to_nchw(code_flat), to_nchw(code_ema_flat)


def _reference(x_tokens, p):
    """Pure-JAX reference of one head pair with the same bf16/f32 numerics."""
    xb = x_tokens.astype(jnp.bfloat16)
    lin = jnp.dot(xb, p['w1'].astype(jnp.bfloat16),
                  preferred_element_type=jnp.float32) + p['b1']
    h = jnp.maximum(jnp.dot(xb, p['w2a'].astype(jnp.bfloat16),
                            preferred_element_type=jnp.float32) + p['b2a'], 0.0)
    nl = jnp.dot(h.astype(jnp.bfloat16), p['w2b'].astype(jnp.bfloat16),
                 preferred_element_type=jnp.float32) + p['b2b']
    return lin + nl


if __name__ == "__main__":
    key = jax.random.PRNGKey(0)
    k_img, k_feat, k_par = jax.random.split(key, 3)

    B = 2
    img = jax.random.normal(k_img, (B, 3, 64, 64), jnp.float32)        # NCHW image
    feat_h = feat_w = 64 // PATCH                                      # 8 x 8 patches
    feat = jax.random.normal(k_feat, (B, 1 + feat_h * feat_w, N_FEATS),
                             jnp.float32)                              # DINO features stand-in

    params, ema_params = init_params(k_par)

    fwd = jax.jit(dino_featurizer_forward)
    image_feat, code, code_ema = jax.block_until_ready(
        fwd(img, feat, params, ema_params))

    assert image_feat.shape == (B, N_FEATS, feat_h, feat_w)
    assert code.shape == (B, DIM, feat_h, feat_w)
    assert code_ema.shape == (B, DIM, feat_h, feat_w)

    # correctness vs pure-JAX reference (independent weights per head pair)
    x_tok = jnp.transpose(image_feat, (0, 2, 3, 1)).reshape(-1, N_FEATS)

    def to_nchw(flat):
        return jnp.transpose(flat.reshape(B, feat_h, feat_w, -1), (0, 3, 1, 2))

    ref_code = to_nchw(_reference(x_tok, params))
    ref_ema = to_nchw(_reference(x_tok, ema_params))
    assert jnp.allclose(code.astype(jnp.float32), ref_code, atol=2e-2, rtol=2e-2)
    assert jnp.allclose(code_ema.astype(jnp.float32), ref_ema, atol=2e-2, rtol=2e-2)

    print("KERNEL_OK")
</pallas_src>

<mosaic_0001>
module attributes {stable_mosaic.version = 11 : i64} {
  func.func @_clusterer_kernel(%arg0: i32, %arg1: memref<64x128xf32, #tpu.memory_space<vmem>>, %arg2: memref<128x256xbf16, #tpu.memory_space<vmem>>, %arg3: memref<1x256xf32, #tpu.memory_space<vmem>>, %arg4: memref<128x128xbf16, #tpu.memory_space<vmem>>, %arg5: memref<256x128xbf16, #tpu.memory_space<vmem>>, %arg6: memref<1x128xf32, #tpu.memory_space<vmem>>, %arg7: memref<64x128xbf16, #tpu.memory_space<vmem>>) attributes {dimension_semantics = [#tpu.dimension_semantics<parallel>], iteration_bounds = array<i64: 2>, scalar_prefetch = 0 : i64, scratch_operands = 0 : i64, tpu.core_type = #tpu.core_type<tc>, window_params = [{transform_indices = @transform_0, window_bounds = array<i64: 64, 128>}, {pipeline_mode = #tpu.pipeline_mode<synchronous>, transform_indices = @transform_1, window_bounds = array<i64: 128, 256>}, {pipeline_mode = #tpu.pipeline_mode<synchronous>, transform_indices = @transform_2, window_bounds = array<i64: 1, 256>}, {pipeline_mode = #tpu.pipeline_mode<synchronous>, transform_indices = @transform_3, window_bounds = array<i64: 128, 128>}, {pipeline_mode = #tpu.pipeline_mode<synchronous>, transform_indices = @transform_4, window_bounds = array<i64: 256, 128>}, {pipeline_mode = #tpu.pipeline_mode<synchronous>, transform_indices = @transform_5, window_bounds = array<i64: 1, 128>}, {transform_indices = @transform_6, window_bounds = array<i64: 64, 128>}]} {
    %c0 = arith.constant 0 : index
    %c0_0 = arith.constant 0 : index
    %0 = vector.load %arg1[%c0, %c0_0] : memref<64x128xf32, #tpu.memory_space<vmem>>, vector<64x128xf32>
    %1 = arith.truncf %0 : vector<64x128xf32> to vector<64x128xbf16>
    %c0_1 = arith.constant 0 : index
    %c0_2 = arith.constant 0 : index
    %2 = vector.load %arg2[%c0_1, %c0_2] : memref<128x256xbf16, #tpu.memory_space<vmem>>, vector<128x256xbf16>
    %cst = arith.constant dense<0.000000e+00> : vector<64x256xf32>
    %3 = tpu.matmul %1, %2, %cst {dimension_numbers = #tpu.dot_dimension_numbers<[1], [0], [0], [1], [0, 0, 1, 1], [], []>} : vector<64x128xbf16>, vector<128x256xbf16>, vector<64x256xf32> -> vector<64x256xf32>
    %c0_3 = arith.constant 0 : index
    %c0_4 = arith.constant 0 : index
    %4 = vector.load %arg3[%c0_3, %c0_4] : memref<1x256xf32, #tpu.memory_space<vmem>>, vector<1x256xf32>
    %5 = vector.broadcast %4 : vector<1x256xf32> to vector<64x256xf32>
    %6 = arith.addf %3, %5 : vector<64x256xf32>
    %cst_5 = arith.constant 0.000000e+00 : f32
    %7 = vector.broadcast %cst_5 : f32 to vector<64x256xf32>
    %8 = arith.maximumf %6, %7 : vector<64x256xf32>
    %c0_6 = arith.constant 0 : index
    %c0_7 = arith.constant 0 : index
    %9 = vector.load %arg4[%c0_6, %c0_7] : memref<128x128xbf16, #tpu.memory_space<vmem>>, vector<128x128xbf16>
    %cst_8 = arith.constant dense<0.000000e+00> : vector<64x128xf32>
    %10 = tpu.matmul %1, %9, %cst_8 {dimension_numbers = #tpu.dot_dimension_numbers<[1], [0], [0], [1], [0, 0, 1, 1], [], []>} : vector<64x128xbf16>, vector<128x128xbf16>, vector<64x128xf32> -> vector<64x128xf32>
    %11 = arith.truncf %8 : vector<64x256xf32> to vector<64x256xbf16>
    %c0_9 = arith.constant 0 : index
    %c0_10 = arith.constant 0 : index
    %12 = vector.load %arg5[%c0_9, %c0_10] : memref<256x128xbf16, #tpu.memory_space<vmem>>, vector<256x128xbf16>
    %cst_11 = arith.constant dense<0.000000e+00> : vector<64x128xf32>
    %13 = tpu.matmul %11, %12, %cst_11 {dimension_numbers = #tpu.dot_dimension_numbers<[1], [0], [0], [1], [0, 0, 1, 1], [], []>} : vector<64x256xbf16>, vector<256x128xbf16>, vector<64x128xf32> -> vector<64x128xf32>
    %14 = arith.addf %10, %13 : vector<64x128xf32>
    %c0_12 = arith.constant 0 : index
    %c0_13 = arith.constant 0 : index
    %15 = vector.load %arg6[%c0_12, %c0_13] : memref<1x128xf32, #tpu.memory_space<vmem>>, vector<1x128xf32>
    %16 = vector.broadcast %15 : vector<1x128xf32> to vector<64x128xf32>
    %17 = arith.addf %14, %16 : vector<64x128xf32>
    %18 = arith.truncf %17 : vector<64x128xf32> to vector<64x128xbf16>
    %c0_14 = arith.constant 0 : index
    %c0_15 = arith.constant 0 : index
    %19 = vector.load %arg7[%c0_14, %c0_15] : memref<64x128xbf16, #tpu.memory_space<vmem>>, vector<64x128xbf16>
    tpu.vector_store %arg7[%c0_14, %c0_15], %18 {strides = array<i32>} : memref<64x128xbf16, #tpu.memory_space<vmem>>, vector<64x128xbf16>,
    return
  }
  func.func @transform_0(%arg0: i32) -> (i32, i32) {
    %c0_i32 = arith.constant 0 : i32
    %c0_i32_0 = arith.constant 0 : i32
    return %arg0, %c0_i32 : i32, i32
  }
  func.func @transform_1(%arg0: i32) -> (i32, i32) {
    %c0_i32 = arith.constant 0 : i32
    %c0_i32_0 = arith.constant 0 : i32
    %c0_i32_1 = arith.constant 0 : i32
    return %c0_i32, %c0_i32_0 : i32, i32
  }
  func.func @transform_2(%arg0: i32) -> (i32, i32) {
    %c0_i32 = arith.constant 0 : i32
    %c0_i32_0 = arith.constant 0 : i32
    %c0_i32_1 = arith.constant 0 : i32
    return %c0_i32, %c0_i32_0 : i32, i32
  }
  func.func @transform_3(%arg0: i32) -> (i32, i32) {
    %c0_i32 = arith.constant 0 : i32
    %c0_i32_0 = arith.constant 0 : i32
    %c0_i32_1 = arith.constant 0 : i32
    return %c0_i32, %c0_i32_0 : i32, i32
  }
  func.func @transform_4(%arg0: i32) -> (i32, i32) {
    %c0_i32 = arith.constant 0 : i32
    %c0_i32_0 = arith.constant 0 : i32
    %c0_i32_1 = arith.constant 0 : i32
    return %c0_i32, %c0_i32_0 : i32, i32
  }
  func.func @transform_5(%arg0: i32) -> (i32, i32) {
    %c0_i32 = arith.constant 0 : i32
    %c0_i32_0 = arith.constant 0 : i32
    %c0_i32_1 = arith.constant 0 : i32
    return %c0_i32, %c0_i32_0 : i32, i32
  }
  func.func @transform_6(%arg0: i32) -> (i32, i32) {
    %c0_i32 = arith.constant 0 : i32
    %c0_i32_0 = arith.constant 0 : i32
    return %arg0, %c0_i32 : i32, i32
  }
}

</mosaic_0001>

<llo_original>
// kernel: dino_featurizer_forward.1
$region0: #{dino_featurizer_forward.1}
  #allocation0 [shape = 'u32[]', space=smem, size = 0x4, offset = 0x4, fixed_abs, tag = 'smem constant byte address 0x4 - core index']
  #allocation1 [shape = 'u32[72,128]{1,0:T(1,128)}', space=vmem, size = 0x9000, scoped, tag = 'internal scratch']
  %s0 = inlined_call_operand.vmem [shape: f32[128,128], index: 0, kind: input, shape index: {}]
  %s1 = inlined_call_operand.vmem [shape: bf16[128,256], index: 1, kind: input, shape index: {}]
  %s2 = inlined_call_operand.vmem [shape: f32[1,256], index: 2, kind: input, shape index: {}]
  %s3 = inlined_call_operand.vmem [shape: bf16[128,128], index: 3, kind: input, shape index: {}]
  %s4 = inlined_call_operand.vmem [shape: bf16[256,128], index: 4, kind: input, shape index: {}]
  %s5 = inlined_call_operand.vmem [shape: f32[1,128], index: 5, kind: input, shape index: {}]
  %s6 = inlined_call_operand.vmem [shape: bf16[128,128], index: 6, kind: output, shape index: {}]
  %s7 = sld [smem:[#allocation0]]
  $region57: #{dino_featurizer_forward.1} parent=0
    _
  %s9 = ssub.s32 1, %s7
  %s10 = scalar_select 0, %s9, %s7
  loop: start=0, step=1, limit=4
  $region2: #{dino_featurizer_forward.1} parent=0 // loop_pre_header
    _
  $region3: #{dino_featurizer_forward.1} parent=0 // loop_header
    %s12 = sphi 0, %s16
    %p13 = scmp.ge.s32.totalorder %s12, 4
    %s22 = sphi 0, %s24
    %s25 = sphi 0, %s22
    %s26 = sphi 0, %s25
    %s42 = sphi 0, %s26
    %s46 = sphi 0, %s46
    %s48 = sphi 0, %s46
    %s49 = sphi 0, %s48
    %s63 = sphi 0, %s49
    %s67 = sphi 0, %s67
    %s69 = sphi 0, %s67
    %s70 = sphi 0, %s69
    %s84 = sphi 0, %s70
    %s88 = sphi 0, %s88
    %s90 = sphi 0, %s88
    %s91 = sphi 0, %s90
    %s105 = sphi 0, %s91
    %s109 = sphi 0, %s109
    %s111 = sphi 0, %s109
    %s112 = sphi 0, %s111
    %s126 = sphi 0, %s112
    %s130 = sphi 0, %s130
    %s132 = sphi 0, %s130
    %s133 = sphi 0, %s132
    %s147 = sphi 0, %s133
    %s153 = sphi 0, %s155
    %s156 = sphi 0, %s153
    %s157 = sphi 0, %s156
    %s173 = sphi 0, %s157
  $region4: #{dino_featurizer_forward.1} parent=0 // loop_header_branch
    %15 = sbr.rel (%p13) target = $region8
  $region5: #{dino_featurizer_forward.1} parent=0 // loop_body
    %s17 = ssub.s32 %s12, 1
    %s18 = ssub.s32 %s12, 2
    %s19 = sadd.s32 %s12, 1
    %s20 = ssub.s32 %s12, %s19
    %p21 = scmp.eq.s32.totalorder %s20, 0
    %s23 = sadd.s32 %s22, 1
    %s24 = scalar_select %p21, %s22, %s23
    %p27 = pneg %p21
    %p28 = scmp.eq.s32.totalorder %s12, 1
    %p29 = por %p27, %p28
    %p30 = scmp.ne.s32.totalorder %s22, %s25
    %p31 = scmp.eq.s32.totalorder %s12, 0
    %p32 = por %p30, %p31
    %p33 = scmp.ne.s32.totalorder %s22, %s25
    %p34 = scmp.eq.s32.totalorder %s17, 1
    %p35 = por %p33, %p34
    %p36 = scmp.ne.s32.totalorder %s25, %s26
    %p37 = scmp.eq.s32.totalorder %s17, 0
    %p38 = por %p36, %p37
    %p39 = scmp.ne.s32.totalorder %s25, %s26
    %p40 = scmp.eq.s32.totalorder %s18, 1
    %p41 = por %p39, %p40
    %p43 = scmp.ne.s32.totalorder %s26, %s42
    %p44 = scmp.eq.s32.totalorder %s18, 0
    %p45 = por %p43, %p44
    %s47 = sadd.s32 %s46, 1
    %p50 = scmp.eq.s32.totalorder %s12, 1
    %p51 = scmp.ne.s32.totalorder %s46, %s48
    %p52 = scmp.eq.s32.totalorder %s12, 0
    %p53 = por %p51, %p52
    %p54 = scmp.ne.s32.totalorder %s46, %s48
    %p55 = scmp.eq.s32.totalorder %s17, 1
    %p56 = por %p54, %p55
    %p57 = scmp.ne.s32.totalorder %s48, %s49
    %p58 = scmp.eq.s32.totalorder %s17, 0
    %p59 = por %p57, %p58
    %p60 = scmp.ne.s32.totalorder %s48, %s49
    %p61 = scmp.eq.s32.totalorder %s18, 1
    %p62 = por %p60, %p61
    %p64 = scmp.ne.s32.totalorder %s49, %s63
    %p65 = scmp.eq.s32.totalorder %s18, 0
    %p66 = por %p64, %p65
    %s68 = sadd.s32 %s67, 1
    %p71 = scmp.eq.s32.totalorder %s12, 1
    %p72 = scmp.ne.s32.totalorder %s67, %s69
    %p73 = scmp.eq.s32.totalorder %s12, 0
    %p74 = por %p72, %p73
    %p75 = scmp.ne.s32.totalorder %s67, %s69
    %p76 = scmp.eq.s32.totalorder %s17, 1
    %p77 = por %p75, %p76
    %p78 = scmp.ne.s32.totalorder %s69, %s70
    %p79 = scmp.eq.s32.totalorder %s17, 0
    %p80 = por %p78, %p79
    %p81 = scmp.ne.s32.totalorder %s69, %s70
    %p82 = scmp.eq.s32.totalorder %s18, 1
    %p83 = por %p81, %p82
    %p85 = scmp.ne.s32.totalorder %s70, %s84
    %p86 = scmp.eq.s32.totalorder %s18, 0
    %p87 = por %p85, %p86
    %s89 = sadd.s32 %s88, 1
    %p92 = scmp.eq.s32.totalorder %s12, 1
    %p93 = scmp.ne.s32.totalorder %s88, %s90
    %p94 = scmp.eq.s32.totalorder %s12, 0
    %p95 = por %p93, %p94
    %p96 = scmp.ne.s32.totalorder %s88, %s90
    %p97 = scmp.eq.s32.totalorder %s17, 1
    %p98 = por %p96, %p97
    %p99 = scmp.ne.s32.totalorder %s90, %s91
    %p100 = scmp.eq.s32.totalorder %s17, 0
    %p101 = por %p99, %p100
    %p102 = scmp.ne.s32.totalorder %s90, %s91
    %p103 = scmp.eq.s32.totalorder %s18, 1
    %p104 = por %p102, %p103
    %p106 = scmp.ne.s32.totalorder %s91, %s105
    %p107 = scmp.eq.s32.totalorder %s18, 0
    %p108 = por %p106, %p107
    %s110 = sadd.s32 %s109, 1
    %p113 = scmp.eq.s32.totalorder %s12, 1
    %p114 = scmp.ne.s32.totalorder %s109, %s111
    %p115 = scmp.eq.s32.totalorder %s12, 0
    %p116 = por %p114, %p115
    %p117 = scmp.ne.s32.totalorder %s109, %s111
    %p118 = scmp.eq.s32.totalorder %s17, 1
    %p119 = por %p117, %p118
    %p120 = scmp.ne.s32.totalorder %s111, %s112
    %p121 = scmp.eq.s32.totalorder %s17, 0
    %p122 = por %p120, %p121
    %p123 = scmp.ne.s32.totalorder %s111, %s112
    %p124 = scmp.eq.s32.totalorder %s18, 1
    %p125 = por %p123, %p124
    %p127 = scmp.ne.s32.totalorder %s112, %s126
    %p128 = scmp.eq.s32.totalorder %s18, 0
    %p129 = por %p127, %p128
    %s131 = sadd.s32 %s130, 1
    %p134 = scmp.eq.s32.totalorder %s12, 1
    %p135 = scmp.ne.s32.totalorder %s130, %s132
    %p136 = scmp.eq.s32.totalorder %s12, 0
    %p137 = por %p135, %p136
    %p138 = scmp.ne.s32.totalorder %s130, %s132
    %p139 = scmp.eq.s32.totalorder %s17, 1
    %p140 = por %p138, %p139
    %p141 = scmp.ne.s32.totalorder %s132, %s133
    %p142 = scmp.eq.s32.totalorder %s17, 0
    %p143 = por %p141, %p142
    %p144 = scmp.ne.s32.totalorder %s132, %s133
    %p145 = scmp.eq.s32.totalorder %s18, 1
    %p146 = por %p144, %p145
    %p148 = scmp.ne.s32.totalorder %s133, %s147
    %p149 = scmp.eq.s32.totalorder %s18, 0
    %p150 = por %p148, %p149
    %s151 = ssub.s32 %s12, %s19
    %p152 = scmp.eq.s32.totalorder %s151, 0
    %s154 = sadd.s32 %s153, 1
    %s155 = scalar_select %p152, %s153, %s154
    %p158 = pneg %p152
    %p159 = scmp.eq.s32.totalorder %s12, 1
    %p160 = por %p158, %p159
    %p161 = scmp.ne.s32.totalorder %s153, %s156
    %p162 = scmp.eq.s32.totalorder %s12, 0
    %p163 = por %p161, %p162
    %p164 = scmp.ne.s32.totalorder %s153, %s156
    %p165 = scmp.eq.s32.totalorder %s17, 1
    %p166 = por %p164, %p165
    %p167 = scmp.ne.s32.totalorder %s156, %s157
    %p168 = scmp.eq.s32.totalorder %s17, 0
    %p169 = por %p167, %p168
    %p170 = scmp.ne.s32.totalorder %s156, %s157
    %p171 = scmp.eq.s32.totalorder %s18, 1
    %p172 = por %p170, %p171
    %p174 = scmp.ne.s32.totalorder %s157, %s173
    %p175 = scmp.eq.s32.totalorder %s18, 0
    %p176 = por %p174, %p175
    %p177 = scmp.le.s32.totalorder 1, %s12
    %p178 = scmp.lt.s32.totalorder %s12, 3
    %p179 = pnand %p177, %p178
    %p180 = pneg %p179
    // Predicated region
    $region9: #{dino_featurizer_forward.1} parent=5 // pred_check
      _
    $region10: #{dino_featurizer_forward.1} parent=5 // pred_check_branch
      %182 = sbr.rel (%p179) target = $region12
    $region11: #{dino_featurizer_forward.1} parent=5 // pred_region
      %s183 = ssub.s32 %s12, 1
      // Predicated region
      $region13: #{dino_featurizer_forward.1} parent=11 // pred_check
        %p184 = pneg %p59
      $region14: #{dino_featurizer_forward.1} parent=11 // pred_check_branch
        %186 = sbr.rel (%p184) target = $region16
      $region15: #{dino_featurizer_forward.1} parent=11 // pred_region
        _
      $region16: #{dino_featurizer_forward.1} parent=11 // pred_fallthru
        _
      // Predicated region
      $region17: #{dino_featurizer_forward.1} parent=11 // pred_check
        %p187 = pneg %p80
      $region18: #{dino_featurizer_forward.1} parent=11 // pred_check_branch
        %189 = sbr.rel (%p187) target = $region20
      $region19: #{dino_featurizer_forward.1} parent=11 // pred_region
        _
      $region20: #{dino_featurizer_forward.1} parent=11 // pred_fallthru
        _
      // Predicated region
      $region21: #{dino_featurizer_forward.1} parent=11 // pred_check
        %p190 = pneg %p101
      $region22: #{dino_featurizer_forward.1} parent=11 // pred_check_branch
        %192 = sbr.rel (%p190) target = $region24
      $region23: #{dino_featurizer_forward.1} parent=11 // pred_region
        _
      $region24: #{dino_featurizer_forward.1} parent=11 // pred_fallthru
        _
      // Predicated region
      $region25: #{dino_featurizer_forward.1} parent=11 // pred_check
        %p193 = pneg %p122
      $region26: #{dino_featurizer_forward.1} parent=11 // pred_check_branch
        %195 = sbr.rel (%p193) target = $region28
      $region27: #{dino_featurizer_forward.1} parent=11 // pred_region
        _
      $region28: #{dino_featurizer_forward.1} parent=11 // pred_fallthru
        _
      // Predicated region
      $region29: #{dino_featurizer_forward.1} parent=11 // pred_check
        %p196 = pneg %p143
      $region30: #{dino_featurizer_forward.1} parent=11 // pred_check_branch
        %198 = sbr.rel (%p196) target = $region32
      $region31: #{dino_featurizer_forward.1} parent=11 // pred_region
        _
      $region32: #{dino_featurizer_forward.1} parent=11 // pred_fallthru
        _
    $region12: #{dino_featurizer_forward.1} parent=5 // pred_fallthru
      _
    %p199 = scmp.lt.s32.totalorder %s12, 2
    // Predicated region
    $region33: #{dino_featurizer_forward.1} parent=5 // pred_check
      %p200 = pneg %p199
    $region34: #{dino_featurizer_forward.1} parent=5 // pred_check_branch
      %202 = sbr.rel (%p200) target = $region36
    $region35: #{dino_featurizer_forward.1} parent=5 // pred_region
      // Predicated region
      $region37: #{dino_featurizer_forward.1} parent=35 // pred_check
        %p203 = pneg %p32
      $region38: #{dino_featurizer_forward.1} parent=35 // pred_check_branch
        %205 = sbr.rel (%p203) target = $region40
      $region39: #{dino_featurizer_forward.1} parent=35 // pred_region
        %s206 = smul.u32 8, %s12
        %p207 = scmp.lt.s32.totalorder %s206, 15
        %s208 = scalar_select %p207, %s206, 15
        %s209 = smul.addr %s208, 8
        %s210 = scalar_lea.vmem %s0, %s209
        %s211 = smul.u32 8, %s12
      $region40: #{dino_featurizer_forward.1} parent=35 // pred_fallthru
        _
    $region36: #{dino_featurizer_forward.1} parent=5 // pred_fallthru
      _
    %p212 = scmp.le.s32.totalorder 1, %s12
    %p213 = scmp.lt.s32.totalorder %s12, 3
    %p214 = pnand %p212, %p213
    %p215 = pneg %p214
    // Predicated region
    $region41: #{dino_featurizer_forward.1} parent=5 // pred_check
      _
    $region42: #{dino_featurizer_forward.1} parent=5 // pred_check_branch
      %217 = sbr.rel (%p214) target = $region44
    $region43: #{dino_featurizer_forward.1} parent=5 // pred_region
      %s218 = ssub.s32 %s12, 1
      %s219 = smul.u32 8, %s17
      %p220 = scmp.lt.s32.totalorder %s219, 15
      %s221 = scalar_select %p220, %s219, 15
      %s222 = smul.addr %s221, 8
      %s223 = scalar_lea.vmem %s0, %s222
      %p224 = pneg %p38
      %p225 = pneg %p35
      %p226 = pneg %p59
      %p227 = pneg %p56
      %p228 = pneg %p80
      %p229 = pneg %p77
      %p230 = pneg %p101
      %p231 = pneg %p98
      %p232 = pneg %p122
      %p233 = pneg %p119
      %p234 = pneg %p143
      %p235 = pneg %p140
      %p236 = pneg %p169
      %p237 = pneg %p166
      %s238 = smul.u32 8, %s17
      %p239 = scmp.lt.s32.totalorder %s238, 15
      %s240 = scalar_select %p239, %s238, 15
      %s241 = smul.addr %s240, 4
      %s242 = scalar_lea.vmem %s6, %s241
      %s243 = smul.u32 8, %s17
      %p244 = scmp.lt.s32.totalorder %s243, 15
      %s245 = scalar_select %p244, %s243, 15
      %s246 = smul.addr %s245, 8
      %s247 = scalar_lea.vmem %s0, %s246
      %s248 = smul.u32 8, %s17
      %s249 = smul.u32 8, %s17
      %p250 = scmp.lt.s32.totalorder %s249, 15
      %s251 = scalar_select %p250, %s249, 15
      %s252 = smul.addr %s251, 4
      %s253 = scalar_lea.vmem %s6, %s252
      %s254 = smul.u32 8, %s17
      %v255 = vld [vmem:[%s247] sm:$0xff]
      %v256 = vld [vmem:[%s247 + $0x8] sm:$0xff]
      %v257 = vld [vmem:[%s247 + $0x10] sm:$0xff]
      %v258 = vld [vmem:[%s247 + $0x18] sm:$0xff]
      %v259 = vld [vmem:[%s247 + $0x20] sm:$0xff]
      %v260 = vld [vmem:[%s247 + $0x28] sm:$0xff]
      %v261 = vld [vmem:[%s247 + $0x30] sm:$0xff]
      %v262 = vld [vmem:[%s247 + $0x38] sm:$0xff]
      %v263 = vpack.c.bf16 %v256, %v255
      %v264 = vpack.c.bf16 %v258, %v257
      %v265 = vpack.c.bf16 %v260, %v259
      %v266 = vpack.c.bf16 %v262, %v261
      %v267 = vld [vmem:[%s1] sm:$0xff]
      %v268 = vld [vmem:[%s1 + $0x8] sm:$0xff]
      %v269 = vld [vmem:[%s1 + $0x10] sm:$0xff]
      %v270 = vld [vmem:[%s1 + $0x18] sm:$0xff]
      %v271 = vld [vmem:[%s1 + $0x20] sm:$0xff]
      %v272 = vld [vmem:[%s1 + $0x28] sm:$0xff]
      %v273 = vld [vmem:[%s1 + $0x30] sm:$0xff]
      %v274 = vld [vmem:[%s1 + $0x38] sm:$0xff]
      %v275 = vld [vmem:[%s1 + $0x40] sm:$0xff]
      %v276 = vld [vmem:[%s1 + $0x48] sm:$0xff]
      %v277 = vld [vmem:[%s1 + $0x50] sm:$0xff]
      %v278 = vld [vmem:[%s1 + $0x58] sm:$0xff]
      %v279 = vld [vmem:[%s1 + $0x60] sm:$0xff]
      %v280 = vld [vmem:[%s1 + $0x68] sm:$0xff]
      %v281 = vld [vmem:[%s1 + $0x70] sm:$0xff]
      %v282 = vld [vmem:[%s1 + $0x78] sm:$0xff]
      %v283 = vld [vmem:[%s2] sm:$0x3]
      %v285 = vperm.slane %v283, 0
      %v286 = vperm.slane %v283, 1
      %v305 = vunpack.c.l.b16 %v267
      %v306 = vunpack.c.h.b16 %v267
      %v307 = vunpack.c.l.b16 %v268
      %v308 = vunpack.c.h.b16 %v268
      %v309 = vunpack.c.l.b16 %v269
      %v310 = vunpack.c.h.b16 %v269
      %v311 = vunpack.c.l.b16 %v270
      %v312 = vunpack.c.h.b16 %v270
      %v313 = vunpack.c.l.b16 %v271
      %v314 = vunpack.c.h.b16 %v271
      %v315 = vunpack.c.l.b16 %v272
      %v316 = vunpack.c.h.b16 %v272
      %v317 = vunpack.c.l.b16 %v273
      %v318 = vunpack.c.h.b16 %v273
      %v319 = vunpack.c.l.b16 %v274
      %v320 = vunpack.c.h.b16 %v274
      %v321 = vunpack.c.l.b16 %v275
      %v322 = vunpack.c.h.b16 %v275
      %v323 = vunpack.c.l.b16 %v276
      %v324 = vunpack.c.h.b16 %v276
      %v325 = vunpack.c.l.b16 %v277
      %v326 = vunpack.c.h.b16 %v277
      %v327 = vunpack.c.l.b16 %v278
      %v328 = vunpack.c.h.b16 %v278
      %v329 = vunpack.c.l.b16 %v279
      %v330 = vunpack.c.h.b16 %v279
      %v331 = vunpack.c.l.b16 %v280
      %v332 = vunpack.c.h.b16 %v280
      %v333 = vunpack.c.l.b16 %v281
      %v334 = vunpack.c.h.b16 %v281
      %v335 = vunpack.c.l.b16 %v282
      %v336 = vunpack.c.h.b16 %v282
      %v337 = vpack.c.b16 %v307, %v305
      %v338 = vpack.c.b16 %v308, %v306
      %v339 = vpack.c.b16 %v311, %v309
      %v340 = vpack.c.b16 %v312, %v310
      %v341 = vpack.c.b16 %v315, %v313
      %v342 = vpack.c.b16 %v316, %v314
      %v343 = vpack.c.b16 %v319, %v317
      %v344 = vpack.c.b16 %v320, %v318
      %v345 = vpack.c.b16 %v323, %v321
      %v346 = vpack.c.b16 %v324, %v322
      %v347 = vpack.c.b16 %v327, %v325
      %v348 = vpack.c.b16 %v328, %v326
      %v349 = vpack.c.b16 %v331, %v329
      %v350 = vpack.c.b16 %v332, %v330
      %v351 = vpack.c.b16 %v335, %v333
      %v352 = vpack.c.b16 %v336, %v334
      %369 = vmatpush.bf16.msra.mxu0 %v351
      %370 = vmatpush.bf16.msra.mxu0 %v349
      %371 = vmatpush.bf16.msra.mxu0 %v347
      %372 = vmatpush.bf16.msra.mxu0 %v345
      %373 = vmatpush.bf16.msra.mxu0 %v343
      %374 = vmatpush.bf16.msra.mxu0 %v341
      %375 = vmatpush.bf16.msra.mxu0 %v339
      %376 = vmatpush.bf16.msra.mxu0 %v337
      %377 = vmatmul.bf16.gmra.mxu0 %v263
      %v378 = vpop.f32.mrf.mxu0
      %v379 = vadd.f32 %v285, %v378
      %v380 = vpop.f32.mrf.mxu0
      %v381 = vadd.f32 %v285, %v380
      %382 = vmatmul.bf16.gmra.mxu0 %v264
      %v383 = vpop.f32.mrf.mxu0
      %v384 = vadd.f32 %v285, %v383
      %v385 = vpop.f32.mrf.mxu0
      %v386 = vadd.f32 %v285, %v385
      %387 = vmatmul.bf16.gmra.mxu0 %v265
      %v388 = vpop.f32.mrf.mxu0
      %v389 = vadd.f32 %v285, %v388
      %v390 = vpop.f32.mrf.mxu0
      %v391 = vadd.f32 %v285, %v390
      %392 = vmatmul.bf16.gmra.mxu0 %v266
      %v393 = vpop.f32.mrf.mxu0
      %v394 = vadd.f32 %v285, %v393
      %v395 = vpop.f32.mrf.mxu0
      %v396 = vadd.f32 %v285, %v395
      %397 = vdwg.mxu0
      %398 = vmatpush.bf16.msra.mxu0 %v352
      %399 = vmatpush.bf16.msra.mxu0 %v350
      %400 = vmatpush.bf16.msra.mxu0 %v348
      %401 = vmatpush.bf16.msra.mxu0 %v346
      %402 = vmatpush.bf16.msra.mxu0 %v344
      %403 = vmatpush.bf16.msra.mxu0 %v342
      %404 = vmatpush.bf16.msra.mxu0 %v340
      %405 = vmatpush.bf16.msra.mxu0 %v338
      %406 = vmatmul.bf16.gmra.mxu0 %v263
      %v407 = vpop.f32.mrf.mxu0
      %v408 = vadd.f32 %v286, %v407
      %v409 = vpop.f32.mrf.mxu0
      %v410 = vadd.f32 %v286, %v409
      %411 = vmatmul.bf16.gmra.mxu0 %v264
      %v412 = vpop.f32.mrf.mxu0
      %v413 = vadd.f32 %v286, %v412
      %v414 = vpop.f32.mrf.mxu0
      %v415 = vadd.f32 %v286, %v414
      %416 = vmatmul.bf16.gmra.mxu0 %v265
      %v417 = vpop.f32.mrf.mxu0
      %v418 = vadd.f32 %v286, %v417
      %v419 = vpop.f32.mrf.mxu0
      %v420 = vadd.f32 %v286, %v419
      %421 = vmatmul.bf16.gmra.mxu0 %v266
      %v422 = vpop.f32.mrf.mxu0
      %v423 = vadd.f32 %v286, %v422
      %v424 = vpop.f32.mrf.mxu0
      %v425 = vadd.f32 %v286, %v424
      %426 = vdwg.mxu0
      %v427 = vmax.f32 %v379, 0.0
      %v428 = vmax.f32 %v408, 0.0
      %v429 = vmax.f32 %v381, 0.0
      %v430 = vmax.f32 %v410, 0.0
      %v431 = vmax.f32 %v384, 0.0
      %v432 = vmax.f32 %v413, 0.0
      %v433 = vmax.f32 %v386, 0.0
      %v434 = vmax.f32 %v415, 0.0
      %v435 = vmax.f32 %v389, 0.0
      %v436 = vmax.f32 %v418, 0.0
      %v437 = vmax.f32 %v391, 0.0
      %v438 = vmax.f32 %v420, 0.0
      %v439 = vmax.f32 %v394, 0.0
      %v440 = vmax.f32 %v423, 0.0
      %v441 = vmax.f32 %v396, 0.0
      %v442 = vmax.f32 %v425, 0.0
      %v443 = vld [vmem:[%s3] sm:$0xf]
      %v444 = vld [vmem:[%s3 + $0x4] sm:$0xf]
      %v445 = vld [vmem:[%s3 + $0x8] sm:$0xf]
      %v446 = vld [vmem:[%s3 + $0xc] sm:$0xf]
      %v447 = vld [vmem:[%s3 + $0x10] sm:$0xf]
      %v448 = vld [vmem:[%s3 + $0x14] sm:$0xf]
      %v449 = vld [vmem:[%s3 + $0x18] sm:$0xf]
      %v450 = vld [vmem:[%s3 + $0x1c] sm:$0xf]
      %v451 = vld [vmem:[%s3 + $0x20] sm:$0xf]
      %v452 = vld [vmem:[%s3 + $0x24] sm:$0xf]
      %v453 = vld [vmem:[%s3 + $0x28] sm:$0xf]
      %v454 = vld [vmem:[%s3 + $0x2c] sm:$0xf]
      %v455 = vld [vmem:[%s3 + $0x30] sm:$0xf]
      %v456 = vld [vmem:[%s3 + $0x34] sm:$0xf]
      %v457 = vld [vmem:[%s3 + $0x38] sm:$0xf]
      %v458 = vld [vmem:[%s3 + $0x3c] sm:$0xf]
      %v459 = vpack.c.bf16 %v429, %v427
      %v460 = vpack.c.bf16 %v430, %v428
      %v461 = vpack.c.bf16 %v433, %v431
      %v462 = vpack.c.bf16 %v434, %v432
      %v463 = vpack.c.bf16 %v437, %v435
      %v464 = vpack.c.bf16 %v438, %v436
      %v465 = vpack.c.bf16 %v441, %v439
      %v466 = vpack.c.bf16 %v442, %v440
      %v467 = vld [vmem:[%s4] sm:$0xf]
      %v468 = vld [vmem:[%s4 + $0x4] sm:$0xf]
      %v469 = vld [vmem:[%s4 + $0x8] sm:$0xf]
      %v470 = vld [vmem:[%s4 + $0xc] sm:$0xf]
      %v471 = vld [vmem:[%s4 + $0x10] sm:$0xf]
      %v472 = vld [vmem:[%s4 + $0x14] sm:$0xf]
      %v473 = vld [vmem:[%s4 + $0x18] sm:$0xf]
      %v474 = vld [vmem:[%s4 + $0x1c] sm:$0xf]
      %v475 = vld [vmem:[%s4 + $0x20] sm:$0xf]
      %v476 = vld [vmem:[%s4 + $0x24] sm:$0xf]
      %v477 = vld [vmem:[%s4 + $0x28] sm:$0xf]
      %v478 = vld [vmem:[%s4 + $0x2c] sm:$0xf]
      %v479 = vld [vmem:[%s4 + $0x30] sm:$0xf]
      %v480 = vld [vmem:[%s4 + $0x34] sm:$0xf]
      %v481 = vld [vmem:[%s4 + $0x38] sm:$0xf]
      %v482 = vld [vmem:[%s4 + $0x3c] sm:$0xf]
      %v483 = vld [vmem:[%s4 + $0x40] sm:$0xf]
      %v484 = vld [vmem:[%s4 + $0x44] sm:$0xf]
      %v485 = vld [vmem:[%s4 + $0x48] sm:$0xf]
      %v486 = vld [vmem:[%s4 + $0x4c] sm:$0xf]
      %v487 = vld [vmem:[%s4 + $0x50] sm:$0xf]
      %v488 = vld [vmem:[%s4 + $0x54] sm:$0xf]
      %v489 = vld [vmem:[%s4 + $0x58] sm:$0xf]
      %v490 = vld [vmem:[%s4 + $0x5c] sm:$0xf]
      %v491 = vld [vmem:[%s4 + $0x60] sm:$0xf]
      %v492 = vld [vmem:[%s4 + $0x64] sm:$0xf]
      %v493 = vld [vmem:[%s4 + $0x68] sm:$0xf]
      %v494 = vld [vmem:[%s4 + $0x6c] sm:$0xf]
      %v495 = vld [vmem:[%s4 + $0x70] sm:$0xf]
      %v496 = vld [vmem:[%s4 + $0x74] sm:$0xf]
      %v497 = vld [vmem:[%s4 + $0x78] sm:$0xf]
      %v498 = vld [vmem:[%s4 + $0x7c] sm:$0xf]
      %v531 = vunpack.c.l.b16 %v467
      %v532 = vunpack.c.l.b16 %v468
      %v533 = vunpack.c.l.b16 %v469
      %v534 = vunpack.c.l.b16 %v470
      %v535 = vunpack.c.l.b16 %v471
      %v536 = vunpack.c.l.b16 %v472
      %v537 = vunpack.c.l.b16 %v473
      %v538 = vunpack.c.l.b16 %v474
      %v539 = vunpack.c.l.b16 %v475
      %v540 = vunpack.c.l.b16 %v476
      %v541 = vunpack.c.l.b16 %v477
      %v542 = vunpack.c.l.b16 %v478
      %v543 = vunpack.c.l.b16 %v479
      %v544 = vunpack.c.l.b16 %v480
      %v545 = vunpack.c.l.b16 %v481
      %v546 = vunpack.c.l.b16 %v482
      %v547 = vunpack.c.l.b16 %v483
      %v548 = vunpack.c.l.b16 %v484
      %v549 = vunpack.c.l.b16 %v485
      %v550 = vunpack.c.l.b16 %v486
      %v551 = vunpack.c.l.b16 %v487
      %v552 = vunpack.c.l.b16 %v488
      %v553 = vunpack.c.l.b16 %v489
      %v554 = vunpack.c.l.b16 %v490
      %v555 = vunpack.c.l.b16 %v491
      %v556 = vunpack.c.l.b16 %v492
      %v557 = vunpack.c.l.b16 %v493
      %v558 = vunpack.c.l.b16 %v494
      %v559 = vunpack.c.l.b16 %v495
      %v560 = vunpack.c.l.b16 %v496
      %v561 = vunpack.c.l.b16 %v497
      %v562 = vunpack.c.l.b16 %v498
      %v563 = vpack.c.b16 %v532, %v531
      %v564 = vpack.c.b16 %v534, %v533
      %v565 = vpack.c.b16 %v536, %v535
      %v566 = vpack.c.b16 %v538, %v537
      %v567 = vpack.c.b16 %v540, %v539
      %v568 = vpack.c.b16 %v542, %v541
      %v569 = vpack.c.b16 %v544, %v543
      %v570 = vpack.c.b16 %v546, %v545
      %v571 = vpack.c.b16 %v548, %v547
      %v572 = vpack.c.b16 %v550, %v549
      %v573 = vpack.c.b16 %v552, %v551
      %v574 = vpack.c.b16 %v554, %v553
      %v575 = vpack.c.b16 %v556, %v555
      %v576 = vpack.c.b16 %v558, %v557
      %v577 = vpack.c.b16 %v560, %v559
      %v578 = vpack.c.b16 %v562, %v561
      %595 = vmatpush.bf16.msra.mxu0 %v570
      %596 = vmatpush.bf16.msra.mxu0 %v569
      %597 = vmatpush.bf16.msra.mxu0 %v568
      %598 = vmatpush.bf16.msra.mxu0 %v567
      %599 = vmatpush.bf16.msra.mxu0 %v566
      %600 = vmatpush.bf16.msra.mxu0 %v565
      %601 = vmatpush.bf16.msra.mxu0 %v564
      %602 = vmatpush.bf16.msra.mxu0 %v563
      %603 = vmatmul.bf16.gmra.mxu0 %v459
      %v604 = vpop.f32.mrf.mxu0
      %v605 = vadd.f32 0.0, %v604
      %v606 = vpop.f32.mrf.mxu0
      %v607 = vadd.f32 0.0, %v606
      %608 = vmatmul.bf16.gmra.mxu0 %v461
      %v609 = vpop.f32.mrf.mxu0
      %v610 = vadd.f32 0.0, %v609
      %v611 = vpop.f32.mrf.mxu0
      %v612 = vadd.f32 0.0, %v611
      %613 = vmatmul.bf16.gmra.mxu0 %v463
      %v614 = vpop.f32.mrf.mxu0
      %v615 = vadd.f32 0.0, %v614
      %v616 = vpop.f32.mrf.mxu0
      %v617 = vadd.f32 0.0, %v616
      %618 = vmatmul.bf16.gmra.mxu0 %v465
      %v619 = vpop.f32.mrf.mxu0
      %v620 = vadd.f32 0.0, %v619
      %v621 = vpop.f32.mrf.mxu0
      %v622 = vadd.f32 0.0, %v621
      %623 = vdwg.mxu0
      %624 = vmatpush.bf16.msra.mxu0 %v578
      %625 = vmatpush.bf16.msra.mxu0 %v577
      %626 = vmatpush.bf16.msra.mxu0 %v576
      %627 = vmatpush.bf16.msra.mxu0 %v575
      %628 = vmatpush.bf16.msra.mxu0 %v574
      %629 = vmatpush.bf16.msra.mxu0 %v573
      %630 = vmatpush.bf16.msra.mxu0 %v572
      %631 = vmatpush.bf16.msra.mxu0 %v571
      %632 = vmatmul.bf16.gmra.mxu0 %v460
      %v633 = vpop.f32.mrf.mxu0
      %v634 = vadd.f32 %v605, %v633
      %v635 = vpop.f32.mrf.mxu0
      %v636 = vadd.f32 %v607, %v635
      %637 = vmatmul.bf16.gmra.mxu0 %v462
      %v638 = vpop.f32.mrf.mxu0
      %v639 = vadd.f32 %v610, %v638
      %v640 = vpop.f32.mrf.mxu0
      %v641 = vadd.f32 %v612, %v640
      %642 = vmatmul.bf16.gmra.mxu0 %v464
      %v643 = vpop.f32.mrf.mxu0
      %v644 = vadd.f32 %v615, %v643
      %v645 = vpop.f32.mrf.mxu0
      %v646 = vadd.f32 %v617, %v645
      %647 = vmatmul.bf16.gmra.mxu0 %v466
      %v648 = vpop.f32.mrf.mxu0
      %v649 = vadd.f32 %v620, %v648
      %v650 = vpop.f32.mrf.mxu0
      %v651 = vadd.f32 %v622, %v650
      %652 = vdwg.mxu0
      %v669 = vunpack.c.l.b16 %v443
      %v670 = vunpack.c.l.b16 %v444
      %v671 = vunpack.c.l.b16 %v445
      %v672 = vunpack.c.l.b16 %v446
      %v673 = vunpack.c.l.b16 %v447
      %v674 = vunpack.c.l.b16 %v448
      %v675 = vunpack.c.l.b16 %v449
      %v676 = vunpack.c.l.b16 %v450
      %v677 = vunpack.c.l.b16 %v451
      %v678 = vunpack.c.l.b16 %v452
      %v679 = vunpack.c.l.b16 %v453
      %v680 = vunpack.c.l.b16 %v454
      %v681 = vunpack.c.l.b16 %v455
      %v682 = vunpack.c.l.b16 %v456
      %v683 = vunpack.c.l.b16 %v457
      %v684 = vunpack.c.l.b16 %v458
      %v685 = vpack.c.b16 %v670, %v669
      %v686 = vpack.c.b16 %v672, %v671
      %v687 = vpack.c.b16 %v674, %v673
      %v688 = vpack.c.b16 %v676, %v675
      %v689 = vpack.c.b16 %v678, %v677
      %v690 = vpack.c.b16 %v680, %v679
      %v691 = vpack.c.b16 %v682, %v681
      %v692 = vpack.c.b16 %v684, %v683
      %701 = vmatpush.bf16.msra.mxu0 %v692
      %702 = vmatpush.bf16.msra.mxu0 %v691
      %703 = vmatpush.bf16.msra.mxu0 %v690
      %704 = vmatpush.bf16.msra.mxu0 %v689
      %705 = vmatpush.bf16.msra.mxu0 %v688
      %706 = vmatpush.bf16.msra.mxu0 %v687
      %707 = vmatpush.bf16.msra.mxu0 %v686
      %708 = vmatpush.bf16.msra.mxu0 %v685
      %709 = vmatmul.bf16.gmra.mxu0 %v263
      %v710 = vpop.f32.mrf.mxu0
      %v711 = vadd.f32 %v634, %v710
      %v712 = vpop.f32.mrf.mxu0
      %v713 = vadd.f32 %v636, %v712
      %714 = vmatmul.bf16.gmra.mxu0 %v264
      %v715 = vpop.f32.mrf.mxu0
      %v716 = vadd.f32 %v639, %v715
      %v717 = vpop.f32.mrf.mxu0
      %v718 = vadd.f32 %v641, %v717
      %719 = vmatmul.bf16.gmra.mxu0 %v265
      %v720 = vpop.f32.mrf.mxu0
      %v721 = vadd.f32 %v644, %v720
      %v722 = vpop.f32.mrf.mxu0
      %v723 = vadd.f32 %v646, %v722
      %724 = vmatmul.bf16.gmra.mxu0 %v266
      %v725 = vpop.f32.mrf.mxu0
      %v726 = vadd.f32 %v649, %v725
      %v727 = vpop.f32.mrf.mxu0
      %v728 = vadd.f32 %v651, %v727
      %729 = vdwg.mxu0
      %v730 = vld [vmem:[%s5] sm:$0x1]
      %v732 = vperm.slane %v730, 0
      %v734 = vadd.f32 %v711, %v732
      %v735 = vadd.f32 %v713, %v732
      %v736 = vadd.f32 %v716, %v732
      %v737 = vadd.f32 %v718, %v732
      %v738 = vadd.f32 %v721, %v732
      %v739 = vadd.f32 %v723, %v732
      %v740 = vadd.f32 %v726, %v732
      %v741 = vadd.f32 %v728, %v732
      %v742 = vpack.c.bf16 %v734, %v734
      %v743 = vpack.c.bf16 %v735, %v735
      %v744 = vpack.c.bf16 %v736, %v736
      %v745 = vpack.c.bf16 %v737, %v737
      %v746 = vpack.c.bf16 %v738, %v738
      %v747 = vpack.c.bf16 %v739, %v739
      %v748 = vpack.c.bf16 %v740, %v740
      %v749 = vpack.c.bf16 %v741, %v741
      %750 = vst [vmem:[%s253] sm:$0xf] %v742
      %751 = vst [vmem:[%s253 + $0x4] sm:$0xf] %v743
      %752 = vst [vmem:[%s253 + $0x8] sm:$0xf] %v744
      %753 = vst [vmem:[%s253 + $0xc] sm:$0xf] %v745
      %754 = vst [vmem:[%s253 + $0x10] sm:$0xf] %v746
      %755 = vst [vmem:[%s253 + $0x14] sm:$0xf] %v747
      %756 = vst [vmem:[%s253 + $0x18] sm:$0xf] %v748
      %757 = vst [vmem:[%s253 + $0x1c] sm:$0xf] %v749
      %s758 = smul.u32 8, %s17
      %p759 = scmp.lt.s32.totalorder %s758, 15
      %s760 = scalar_select %p759, %s758, 15
      %s761 = smul.addr %s760, 4
      %s762 = scalar_lea.vmem %s6, %s761
      // Predicated region
      $region45: #{dino_featurizer_forward.1} parent=43 // pred_check
        %p763 = pneg %p166
      $region46: #{dino_featurizer_forward.1} parent=43 // pred_check_branch
        %765 = sbr.rel (%p763) target = $region48
      $region47: #{dino_featurizer_forward.1} parent=43 // pred_region
        %s766 = smul.u32 8, %s17
      $region48: #{dino_featurizer_forward.1} parent=43 // pred_fallthru
        _
    $region44: #{dino_featurizer_forward.1} parent=5 // pred_fallthru
      _
    %p767 = scmp.le.s32.totalorder 2, %s12
    // Predicated region
    $region49: #{dino_featurizer_forward.1} parent=5 // pred_check
      %p768 = pneg %p767
    $region50: #{dino_featurizer_forward.1} parent=5 // pred_check_branch
      %770 = sbr.rel (%p768) target = $region52
    $region51: #{dino_featurizer_forward.1} parent=5 // pred_region
      %s771 = ssub.s32 %s12, 2
      // Predicated region
      $region53: #{dino_featurizer_forward.1} parent=51 // pred_check
        %p772 = pneg %p172
      $region54: #{dino_featurizer_forward.1} parent=51 // pred_check_branch
        %774 = sbr.rel (%p772) target = $region56
      $region55: #{dino_featurizer_forward.1} parent=51 // pred_region
        %s775 = smul.u32 8, %s18
        %p776 = scmp.lt.s32.totalorder %s775, 15
        %s777 = scalar_select %p776, %s775, 15
        %s778 = smul.addr %s777, 4
        %s779 = scalar_lea.vmem %s6, %s778
      $region56: #{dino_featurizer_forward.1} parent=51 // pred_fallthru
        _
    $region52: #{dino_featurizer_forward.1} parent=5 // pred_fallthru
      _
  $region6: #{dino_featurizer_forward.1} parent=0 // loop_footer
    %s16 = sadd.s32 1, %s12
  $region7: #{dino_featurizer_forward.1} parent=0 // loop_footer_branch
    %11 = sbr.rel target = $region3
  $region8: #{dino_featurizer_forward.1} parent=0 // loop_exit
    _

</llo_original>
